<compile_context>
chip_gen: v7x
topology: tpu7x:2x2x1
jax: 0.10.0
libtpu: 0.0.40
codegen_flags: <defaults>
</compile_context>

<pallas_src>
import functools

import jax
import jax.numpy as jnp
from jax.experimental import pallas as pl
from jax.experimental.pallas import tpu as pltpu

EPS = 1e-5
_FUSED_MAX_P = 4096          # single-tile fused path if padded P <= this
_LANE = 128


# --------------------------------------------------------------------------
# Kernels
# --------------------------------------------------------------------------
def _fused_stage_kernel(w_ref, p_ref, g_ref, b_ref, out_ref, *, inv_count):
    """Conv (im2col matmul) + one-pass BN (train) + ReLU in a single tile.

    w_ref:  (C, K)    conv weights as one matrix (K = 9 * Cin)
    p_ref:  (K, Pp)   lane-dense im2col patches (zero-padded columns OK)
    g_ref:  (C, 1)    BN gamma
    b_ref:  (C, 1)    BN beta
    out_ref:(C, Pp)   normalized + ReLU'd activations (padded cols are junk)
    """
    conv = jnp.dot(w_ref[...], p_ref[...], preferred_element_type=jnp.float32)
    s = jnp.sum(conv, axis=1, keepdims=True)            # (C, 1)
    ss = jnp.sum(conv * conv, axis=1, keepdims=True)    # (C, 1)
    mean = s * inv_count
    var = ss * inv_count - mean * mean                  # biased variance
    scale = g_ref[...] * jax.lax.rsqrt(var + EPS)
    shift = b_ref[...] - mean * scale
    out_ref[...] = jnp.maximum(conv * scale + shift, 0.0)


def _conv_stats_kernel(w_ref, p_ref, conv_ref, stats_ref):
    """One im2col matmul tile + per-tile BatchNorm partial sums.

    conv_ref:  (C, TP)   lane-dense conv output tile (f32)
    stats_ref: (1, C, 2) per-tile [sum, sum-of-squares] per channel
    """
    conv = jnp.dot(w_ref[...], p_ref[...], preferred_element_type=jnp.float32)
    conv_ref[...] = conv
    s = jnp.sum(conv, axis=1, keepdims=True)
    ss = jnp.sum(conv * conv, axis=1, keepdims=True)
    stats_ref[0] = jnp.concatenate([s, ss], axis=1)     # single (C, 2) store


def _bn_relu_kernel(scale_ref, shift_ref, conv_ref, out_ref):
    """Apply folded BatchNorm (per-channel scale/shift) + ReLU, lane-dense."""
    out_ref[...] = jnp.maximum(conv_ref[...] * scale_ref[...] + shift_ref[...], 0.0)


# --------------------------------------------------------------------------
# Wrapper glue
# --------------------------------------------------------------------------
def _round_up(n, m):
    return ((n + m - 1) // m) * m


def _pick_tile(Pp):
    for tp in (1024, 512, 256, 128):
        if Pp % tp == 0:
            return tp
    return Pp  # unreachable: Pp is always a multiple of 128


def _im2col_3x3(x):
    """x: (N, C, H, W) -> (9*C, N*H*W) patch matrix for 3x3, padding=1 conv.

    Column p = ((n*H)+h)*W + w ; row k = (dy*3 + dx)*C + c.
    Pure XLA layout plumbing (no compute).
    """
    N, C, H, W = x.shape
    xpad = jnp.pad(x, ((0, 0), (0, 0), (1, 1), (1, 1)))
    taps = [xpad[:, :, dy:dy + H, dx:dx + W] for dy in range(3) for dx in range(3)]
    pat = jnp.stack(taps, axis=0)                 # (9, N, C, H, W)
    pat = jnp.transpose(pat, (0, 2, 1, 3, 4))     # (9, C, N, H, W)
    return pat.reshape(9 * C, N * H * W)


def _compiler_params():
    return pltpu.CompilerParams(
        dimension_semantics=("parallel",),          # independent P tiles
        vmem_limit_bytes=32 * 1024 * 1024,          # fits v7x's 64 MiB VMEM
    )


def _conv_bn_relu_stage(patches, w_mat, gamma, beta, compute_dtype=jnp.float32):
    """Conv(3x3,pad=1) -> BatchNorm(train) -> ReLU over a (K, P) patch matrix.

    Returns the activation in (C, P) layout (lane dim = P, lane-dense).
    """
    C, K = w_mat.shape
    P = patches.shape[1]
    Pp = _round_up(P, _LANE)
    if Pp != P:
        # Zero columns contribute 0 to both BN sums; divide by true P later.
        patches = jnp.pad(patches, ((0, 0), (0, Pp - P)))

    w_c = w_mat.astype(compute_dtype)
    p_c = patches.astype(compute_dtype)
    g_col = gamma.reshape(C, 1).astype(jnp.float32)
    b_col = beta.reshape(C, 1).astype(jnp.float32)
    cparams = _compiler_params()

    # -------- Fused single-tile fast path (no HBM round trip for conv) ------
    if Pp <= _FUSED_MAX_P:
        kernel = functools.partial(_fused_stage_kernel, inv_count=1.0 / float(P))
        h = pl.pallas_call(
            kernel,
            grid=(1,),
            in_specs=[
                pl.BlockSpec((C, K), lambda t: (0, 0)),
                pl.BlockSpec((K, Pp), lambda t: (0, 0)),
                pl.BlockSpec((C, 1), lambda t: (0, 0)),
                pl.BlockSpec((C, 1), lambda t: (0, 0)),
            ],
            out_specs=pl.BlockSpec((C, Pp), lambda t: (0, 0)),
            out_shape=jax.ShapeDtypeStruct((C, Pp), jnp.float32),
            compiler_params=cparams,
        )(w_c, p_c, g_col, b_col)
        return h[:, :P]

    # -------- Tiled two-pass path (large P) ---------------------------------
    tp = _pick_tile(Pp)
    nt = Pp // tp

    # Pass 1: conv tiles + per-tile BN partial sums.
    conv, stats = pl.pallas_call(
        _conv_stats_kernel,
        grid=(nt,),
        in_specs=[
            pl.BlockSpec((C, K), lambda t: (0, 0)),      # weights, resident
            pl.BlockSpec((K, tp), lambda t: (0, t)),     # lane-dense patch tile
        ],
        out_specs=(
            pl.BlockSpec((C, tp), lambda t: (0, t)),     # lane-dense conv tile
            pl.BlockSpec((1, C, 2), lambda t: (t, 0, 0)),
        ),
        out_shape=(
            jax.ShapeDtypeStruct((C, Pp), jnp.float32),
            jax.ShapeDtypeStruct((nt, C, 2), jnp.float32),
        ),
        compiler_params=cparams,
    )(w_c, p_c)

    # Finalize BN statistics (biased variance over the true P positions) and
    # fold gamma/beta into one per-channel scale/shift.  Tiny (C,)-sized math.
    total = jnp.sum(stats, axis=0)                       # (C, 2)
    mean = total[:, 0:1] / P
    var = total[:, 1:2] / P - mean * mean
    scale = g_col * jax.lax.rsqrt(var + EPS)
    shift = b_col - mean * scale

    # Pass 2: normalize + ReLU, lane-dense in / lane-dense out.
    h = pl.pallas_call(
        _bn_relu_kernel,
        grid=(nt,),
        in_specs=[
            pl.BlockSpec((C, 1), lambda t: (0, 0)),      # scale, resident
            pl.BlockSpec((C, 1), lambda t: (0, 0)),      # shift, resident
            pl.BlockSpec((C, tp), lambda t: (0, t)),
        ],
        out_specs=pl.BlockSpec((C, tp), lambda t: (0, t)),
        out_shape=jax.ShapeDtypeStruct((C, Pp), jnp.float32),
        compiler_params=cparams,
    )(scale, shift, conv)
    return h[:, :P]


def encoder2d_forward(x, params, compute_dtype=jnp.float32):
    """x: (N, Cin, H, W) float32 (NCHW). Returns (N, Cout, H//2, W//2)."""
    w1, b1, g1, be1, w2, b2, g2, be2 = params
    # Conv biases cancel exactly under training-mode BatchNorm -> unused.
    del b1, b2

    N, Cin, H, W = x.shape
    Ho, Wo = H // 2, W // 2
    Cmid, Cout = w1.shape[0], w2.shape[0]

    # MaxPool2d(kernel_size=2, stride=2) in the wrapper (pure reshape/reduce).
    xp = x[:, :, :2 * Ho, :2 * Wo].reshape(N, Cin, Ho, 2, Wo, 2).max(axis=(3, 5))

    # Stage 1: Conv3x3 -> BN -> ReLU.
    patches1 = _im2col_3x3(xp)                                          # (9*Cin, P)
    w1_mat = jnp.transpose(w1, (0, 2, 3, 1)).reshape(Cmid, 9 * Cin).astype(jnp.float32)
    h1 = _conv_bn_relu_stage(patches1, w1_mat, g1, be1, compute_dtype)  # (Cmid, P)

    # Stage 2: Conv3x3 -> BN -> ReLU.
    h1_img = jnp.transpose(h1.reshape(Cmid, N, Ho, Wo), (1, 0, 2, 3))   # (N,Cmid,Ho,Wo)
    patches2 = _im2col_3x3(h1_img)                                      # (9*Cmid, P)
    w2_mat = jnp.transpose(w2, (0, 2, 3, 1)).reshape(Cout, 9 * Cmid).astype(jnp.float32)
    h2 = _conv_bn_relu_stage(patches2, w2_mat, g2, be2, compute_dtype)  # (Cout, P)

    return jnp.transpose(h2.reshape(Cout, N, Ho, Wo), (1, 0, 2, 3))     # NCHW


# --------------------------------------------------------------------------
# Pure-JAX reference (independent conv / pooling / BN path)
# --------------------------------------------------------------------------
def _reference(x, params):
    w1, b1, g1, be1, w2, b2, g2, be2 = params
    N, C, H, W = x.shape
    xp = x.reshape(N, C, H // 2, 2, W // 2, 2).max(axis=(3, 5))

    def conv_bn_relu(h, w, b, g, be):
        y = jax.lax.conv_general_dilated(
            h, w, window_strides=(1, 1), padding=((1, 1), (1, 1)),
            dimension_numbers=('NCHW', 'OIHW', 'NCHW'))
        y = y + b[None, :, None, None]
        m = jnp.mean(y, axis=(0, 2, 3), keepdims=True)
        v = jnp.mean(jnp.square(y - m), axis=(0, 2, 3), keepdims=True)
        y = (y - m) * jax.lax.rsqrt(v + EPS)
        y = y * g[None, :, None, None] + be[None, :, None, None]
        return jnp.maximum(y, 0.0)

    h = conv_bn_relu(xp, w1, b1, g1, be1)
    return conv_bn_relu(h, w2, b2, g2, be2)


if __name__ == "__main__":
    # Encoder2D(in_channels=4, middle_channels=8, out_channels=8)
    N, Cin, H, W = 2, 4, 16, 16
    Cmid, Cout = 8, 8

    key = jax.random.PRNGKey(0)
    k1, k2, k3, k4, kx = jax.random.split(key, 5)
    w1 = 0.1 * jax.random.normal(k1, (Cmid, Cin, 3, 3), jnp.float32)
    b1 = 0.1 * jax.random.normal(k2, (Cmid,), jnp.float32)
    g1 = jnp.ones((Cmid,), jnp.float32)        # BatchNorm2d default init
    be1 = jnp.zeros((Cmid,), jnp.float32)
    w2 = 0.1 * jax.random.normal(k3, (Cout, Cmid, 3, 3), jnp.float32)
    b2 = 0.1 * jax.random.normal(k4, (Cout,), jnp.float32)
    g2 = jnp.ones((Cout,), jnp.float32)
    be2 = jnp.zeros((Cout,), jnp.float32)
    params = (w1, b1, g1, be1, w2, b2, g2, be2)

    x = jax.random.normal(kx, (N, Cin, H, W), jnp.float32)

    out = jax.block_until_ready(encoder2d_forward(x, params))
    ref = jax.block_until_ready(_reference(x, params))

    assert out.shape == (N, Cout, H // 2, W // 2), out.shape
    assert jnp.allclose(out, ref, rtol=2e-4, atol=2e-4), \
        float(jnp.max(jnp.abs(out - ref)))
    print("KERNEL_OK")
</pallas_src>

<mosaic_0001>
module attributes {stable_mosaic.version = 11 : i64} {
  func.func @_fused_stage_kernel(%arg0: i32, %arg1: memref<8x36xf32, #tpu.memory_space<vmem>>, %arg2: memref<36x128xf32, #tpu.memory_space<vmem>>, %arg3: memref<8x1xf32, #tpu.memory_space<vmem>>, %arg4: memref<8x1xf32, #tpu.memory_space<vmem>>, %arg5: memref<8x128xf32, #tpu.memory_space<vmem>>) attributes {dimension_semantics = [#tpu.dimension_semantics<parallel>], iteration_bounds = array<i64: 1>, scalar_prefetch = 0 : i64, scratch_operands = 0 : i64, tpu.core_type = #tpu.core_type<tc>, window_params = [{pipeline_mode = #tpu.pipeline_mode<synchronous>, transform_indices = @transform_0, window_bounds = array<i64: 8, 36>}, {pipeline_mode = #tpu.pipeline_mode<synchronous>, transform_indices = @transform_1, window_bounds = array<i64: 36, 128>}, {pipeline_mode = #tpu.pipeline_mode<synchronous>, transform_indices = @transform_2, window_bounds = array<i64: 8, 1>}, {pipeline_mode = #tpu.pipeline_mode<synchronous>, transform_indices = @transform_3, window_bounds = array<i64: 8, 1>}, {pipeline_mode = #tpu.pipeline_mode<synchronous>, transform_indices = @transform_4, window_bounds = array<i64: 8, 128>}]} {
    %c0 = arith.constant 0 : index
    %c0_0 = arith.constant 0 : index
    %0 = vector.load %arg1[%c0, %c0_0] : memref<8x36xf32, #tpu.memory_space<vmem>>, vector<8x36xf32>
    %c0_1 = arith.constant 0 : index
    %c0_2 = arith.constant 0 : index
    %1 = vector.load %arg2[%c0_1, %c0_2] : memref<36x128xf32, #tpu.memory_space<vmem>>, vector<36x128xf32>
    %cst = arith.constant dense<0.000000e+00> : vector<8x128xf32>
    %2 = tpu.matmul %0, %1, %cst {dimension_numbers = #tpu.dot_dimension_numbers<[1], [0], [0], [1], [0, 0, 1, 1], [], []>} : vector<8x36xf32>, vector<36x128xf32>, vector<8x128xf32> -> vector<8x128xf32>
    %cst_3 = arith.constant dense<0.000000e+00> : vector<8xf32>
    %3 = vector.multi_reduction <add>, %2, %cst_3 [1] : vector<8x128xf32> to vector<8xf32>
    %4 = vector.shape_cast %3 : vector<8xf32> to vector<8x1xf32>
    %5 = arith.mulf %2, %2 : vector<8x128xf32>
    %cst_4 = arith.constant dense<0.000000e+00> : vector<8xf32>
    %6 = vector.multi_reduction <add>, %5, %cst_4 [1] : vector<8x128xf32> to vector<8xf32>
    %7 = vector.shape_cast %6 : vector<8xf32> to vector<8x1xf32>
    %cst_5 = arith.constant 7.812500e-03 : f32
    %8 = vector.broadcast %cst_5 : f32 to vector<8x1xf32>
    %9 = arith.mulf %4, %8 : vector<8x1xf32>
    %cst_6 = arith.constant 7.812500e-03 : f32
    %10 = vector.broadcast %cst_6 : f32 to vector<8x1xf32>
    %11 = arith.mulf %7, %10 : vector<8x1xf32>
    %12 = arith.mulf %9, %9 : vector<8x1xf32>
    %13 = arith.subf %11, %12 : vector<8x1xf32>
    %c0_7 = arith.constant 0 : index
    %c0_8 = arith.constant 0 : index
    %14 = vector.load %arg3[%c0_7, %c0_8] : memref<8x1xf32, #tpu.memory_space<vmem>>, vector<8x1xf32>
    %cst_9 = arith.constant 9.99999974E-6 : f32
    %15 = vector.broadcast %cst_9 : f32 to vector<8x1xf32>
    %16 = arith.addf %13, %15 : vector<8x1xf32>
    %17 = math.rsqrt %16 : vector<8x1xf32>
    %18 = arith.mulf %14, %17 : vector<8x1xf32>
    %c0_10 = arith.constant 0 : index
    %c0_11 = arith.constant 0 : index
    %19 = vector.load %arg4[%c0_10, %c0_11] : memref<8x1xf32, #tpu.memory_space<vmem>>, vector<8x1xf32>
    %20 = arith.mulf %9, %18 : vector<8x1xf32>
    %21 = arith.subf %19, %20 : vector<8x1xf32>
    %22 = vector.broadcast %18 : vector<8x1xf32> to vector<8x128xf32>
    %23 = arith.mulf %2, %22 : vector<8x128xf32>
    %24 = vector.broadcast %21 : vector<8x1xf32> to vector<8x128xf32>
    %25 = arith.addf %23, %24 : vector<8x128xf32>
    %cst_12 = arith.constant 0.000000e+00 : f32
    %26 = vector.broadcast %cst_12 : f32 to vector<8x128xf32>
    %27 = arith.maximumf %25, %26 : vector<8x128xf32>
    %c0_13 = arith.constant 0 : index
    %c0_14 = arith.constant 0 : index
    %28 = vector.load %arg5[%c0_13, %c0_14] : memref<8x128xf32, #tpu.memory_space<vmem>>, vector<8x128xf32>
    tpu.vector_store %arg5[%c0_13, %c0_14], %27 {strides = array<i32>} : memref<8x128xf32, #tpu.memory_space<vmem>>, vector<8x128xf32>,
    return
  }
  func.func @transform_0(%arg0: i32) -> (i32, i32) {
    %c0_i32 = arith.constant 0 : i32
    %c0_i32_0 = arith.constant 0 : i32
    %c0_i32_1 = arith.constant 0 : i32
    return %c0_i32, %c0_i32_0 : i32, i32
  }
  func.func @transform_1(%arg0: i32) -> (i32, i32) {
    %c0_i32 = arith.constant 0 : i32
    %c0_i32_0 = arith.constant 0 : i32
    %c0_i32_1 = arith.constant 0 : i32
    return %c0_i32, %c0_i32_0 : i32, i32
  }
  func.func @transform_2(%arg0: i32) -> (i32, i32) {
    %c0_i32 = arith.constant 0 : i32
    %c0_i32_0 = arith.constant 0 : i32
    %c0_i32_1 = arith.constant 0 : i32
    return %c0_i32, %c0_i32_0 : i32, i32
  }
  func.func @transform_3(%arg0: i32) -> (i32, i32) {
    %c0_i32 = arith.constant 0 : i32
    %c0_i32_0 = arith.constant 0 : i32
    %c0_i32_1 = arith.constant 0 : i32
    return %c0_i32, %c0_i32_0 : i32, i32
  }
  func.func @transform_4(%arg0: i32) -> (i32, i32) {
    %c0_i32 = arith.constant 0 : i32
    %c0_i32_0 = arith.constant 0 : i32
    %c0_i32_1 = arith.constant 0 : i32
    return %c0_i32, %c0_i32_0 : i32, i32
  }
}

</mosaic_0001>

<llo_original>
// kernel: tpu_custom_call.1
$region0: #{tpu_custom_call.1}
  #allocation0 [shape = 'u32[]', space=smem, size = 0x4, offset = 0x4, fixed_abs, tag = 'smem constant byte address 0x4 - core index']
  #allocation1 [shape = 'u32[144,128]{1,0:T(1,128)}', space=vmem, size = 0x12000, scoped, tag = 'internal scratch']
  %s0 = inlined_call_operand.vmem [shape: f32[8,36], index: 0, kind: input, shape index: {}]
  %s1 = inlined_call_operand.hbm [shape: f32[36,128], index: 1, kind: input, shape index: {}]
  %s2 = inlined_call_operand.vmem [shape: f32[8,1], index: 2, kind: input, shape index: {}]
  %s3 = inlined_call_operand.vmem [shape: f32[8,1], index: 3, kind: input, shape index: {}]
  %s4 = inlined_call_operand.hbm [shape: f32[8,128], index: 4, kind: output, shape index: {}]
  %s5 = sld [smem:[#allocation0]]
  $region30: #{tpu_custom_call.1} parent=0
    _
  %s7 = ssub.s32 1, %s5
  %s8 = scalar_select 0, %s7, %s5
  $region1: #{tpu_custom_call.1} parent=0
    #allocation2 [shape = 'u8[20480]{0}', space=vmem, size = 0x5000, scoped, tag = 'input window, operand 1, single buffered']
    #allocation3 [shape = 's32[1]{0}', space=sflag, size = 0x4, scoped, tag = 'scoped memory for tpu_custom_call.1']
    #allocation4 [shape = 's32[1]{0}', space=sflag, size = 0x4, scoped, tag = 'scoped memory for tpu_custom_call.1']
    #allocation5 [shape = 'u8[4096]{0}', space=vmem, size = 0x1000, scoped, tag = 'output window, operand 0, single buffered']
    %9 = vsyncpa [#allocation3], 0
    %10 = vsyncpa [#allocation4], 0
    // Predicated region
    $region2: #{tpu_custom_call.1} parent=1 // pred_check
      _
    $region3: #{tpu_custom_call.1} parent=1 // pred_check_branch
      %12 = sbr.rel (0) target = $region5
    $region4: #{tpu_custom_call.1} parent=1 // pred_region
      _
    $region5: #{tpu_custom_call.1} parent=1 // pred_fallthru
      _
    // Predicated region
    $region6: #{tpu_custom_call.1} parent=1 // pred_check
      _
    $region7: #{tpu_custom_call.1} parent=1 // pred_check_branch
      %14 = sbr.rel (0) target = $region9
    $region8: #{tpu_custom_call.1} parent=1 // pred_region
      %s16 = ssub.s32 640, 640
      %17 = vsyncadd [#allocation3], %s16
      %s18 = sshll.u32 [#allocation2], 4
      %s19 = int_to_ptr.vmem [resolvable:$true] %s18
      %24 = dma.hbm_to_vmem [thread:$0]  %s1, 640, %s19, [#allocation3], 128, 128, 8
    $region9: #{tpu_custom_call.1} parent=1 // pred_fallthru
      _
    // Predicated region
    $region10: #{tpu_custom_call.1} parent=1 // pred_check
      _
    $region11: #{tpu_custom_call.1} parent=1 // pred_check_branch
      %26 = sbr.rel (0) target = $region13
    $region12: #{tpu_custom_call.1} parent=1 // pred_region
      _
    $region13: #{tpu_custom_call.1} parent=1 // pred_fallthru
      _
    // Predicated region
    $region14: #{tpu_custom_call.1} parent=1 // pred_check
      _
    $region15: #{tpu_custom_call.1} parent=1 // pred_check_branch
      %28 = sbr.rel (0) target = $region17
    $region16: #{tpu_custom_call.1} parent=1 // pred_region
      _
    $region17: #{tpu_custom_call.1} parent=1 // pred_fallthru
      _
    // Predicated region
    $region18: #{tpu_custom_call.1} parent=1 // pred_check
      _
    $region19: #{tpu_custom_call.1} parent=1 // pred_check_branch
      %30 = sbr.rel (0) target = $region21
    $region20: #{tpu_custom_call.1} parent=1 // pred_region
      %31 = dma.done [#allocation3], 640
    $region21: #{tpu_custom_call.1} parent=1 // pred_fallthru
      _
    %v32 = vld [vmem:[%s0] sm:$0xff]
    %v33 = vld [vmem:[#allocation2] sm:$0xff]
    %v34 = vld [vmem:[#allocation2 + $0x8] sm:$0xff]
    %v35 = vld [vmem:[#allocation2 + $0x10] sm:$0xff]
    %v36 = vld [vmem:[#allocation2 + $0x18] sm:$0xff]
    %v37 = vld [vmem:[#allocation2 + $0x20] sm:$0xf]
    %vm38 = vcmask 293888
    %v40 = vsel %vm38, %v32, 0
    %vm42 = vcmask 1043456
    %v44 = vsel %vm42, %v37, 0
    %46 = vmatprep.subr.mxu0 0.0
    %47 = vmatpush1.msra.mxu0 %v33
    %48 = vmatprep.subr.mxu0 0.0
    %49 = vmatpush1.msra.mxu0 %v34
    %50 = vmatprep.subr.mxu0 0.0
    %51 = vmatpush1.msra.mxu0 %v35
    %52 = vmatprep.subr.mxu0 0.0
    %53 = vmatpush1.msra.mxu0 %v36
    %54 = vmatprep.subr.mxu0 0.0
    %55 = vmatpush1.msra.mxu0 %v44
    %56 = vmatprep.subr.mxu0 0.0
    %57 = vmatpush1.msra.mxu0 0.0
    %58 = vmatprep.subr.mxu0 0.0
    %59 = vmatpush1.msra.mxu0 0.0
    %60 = vmatprep.subr.mxu0 0.0
    %61 = vmatpush1.msra.mxu0 0.0
    %62 = vmatprep.subr.mxu0 0.0
    %63 = vmatpush1.msra.mxu0 0.0
    %64 = vmatprep.subr.mxu0 0.0
    %65 = vmatpush1.msra.mxu0 0.0
    %66 = vmatprep.subr.mxu0 0.0
    %67 = vmatpush1.msra.mxu0 0.0
    %68 = vmatprep.subr.mxu0 0.0
    %69 = vmatpush1.msra.mxu0 0.0
    %70 = vmatprep.subr.mxu0 0.0
    %71 = vmatpush1.msra.mxu0 0.0
    %72 = vmatprep.subr.mxu0 0.0
    %73 = vmatpush1.msra.mxu0 0.0
    %74 = vmatprep.subr.mxu0 0.0
    %75 = vmatpush1.msra.mxu0 0.0
    %76 = vmatprep.subr.mxu0 0.0
    %77 = vmatpush1.msra.mxu0 0.0
    %78 = vmatprep.subr.mxu0 0.0
    %79 = vmatpush1.msra.mxu0 0.0
    %80 = vmatprep.subr.mxu0 0.0
    %81 = vmatpush1.msra.mxu0 0.0
    %82 = vmatprep.subr.mxu0 0.0
    %83 = vmatpush1.msra.mxu0 0.0
    %84 = vmatprep.subr.mxu0 0.0
    %85 = vmatpush1.msra.mxu0 0.0
    %86 = vmatprep.subr.mxu0 0.0
    %87 = vmatpush1.msra.mxu0 0.0
    %88 = vmatprep.subr.mxu0 0.0
    %89 = vmatpush1.msra.mxu0 0.0
    %90 = vmatprep.subr.mxu0 0.0
    %91 = vmatpush1.msra.mxu0 0.0
    %92 = vmatprep.subr.mxu0 0.0
    %93 = vmatpush1.msra.mxu0 0.0
    %94 = vmatprep.subr.mxu0 0.0
    %95 = vmatpush1.msra.mxu0 0.0
    %96 = vmatprep.subr.mxu0 0.0
    %97 = vmatpush1.msra.mxu0 0.0
    %98 = vmatprep.subr.mxu0 0.0
    %99 = vmatpush1.msra.mxu0 0.0
    %100 = vmatprep.subr.mxu0 0.0
    %101 = vmatpush1.msra.mxu0 0.0
    %102 = vmatprep.subr.mxu0 0.0
    %103 = vmatpush1.msra.mxu0 0.0
    %104 = vmatprep.subr.mxu0 0.0
    %105 = vmatpush1.msra.mxu0 0.0
    %106 = vmatprep.subr.mxu0 0.0
    %107 = vmatpush1.msra.mxu0 0.0
    %108 = vmatprep.subr.mxu0 0.0
    %109 = vmatpush1.msra.mxu0 0.0
    %110 = vmatprep.mubr.f32.mxu0 0.0
    %111 = vmatmul.mubr.f32.gmra.mrb[0].mxu0 %v40
    %v112 = vpop.f32.mrb[0].mxu0
    %v113 = vadd.f32 0.0, %v112
    %v114 = vpop.f32.mrb[0].mxu0
    %115 = vdwg.mxu0
    %116 = vadd.xlane.f32.xlu0 %v113
    %v117 = vpop.xlane.xlu0 %116
    %v118 = vmul.f32 %v113, %v113
    %119 = vadd.xlane.f32.xlu0 %v118
    %v120 = vpop.xlane.xlu0 %119
    %v121 = vmul.f32 %v117, 0.0078125
    %v122 = vmul.f32 %v120, 0.0078125
    %v123 = vmul.f32 %v121, %v121
    %v124 = vsub.f32 %v122, %v123
    %v125 = vld [vmem:[%s2] sm:$0xff]
    %v126 = vadd.f32 %v124, 1e-05
    %v127 = vrsqrt.pop %v126
    %v128 = vmul.f32 %v125, %v127
    %v129 = vld [vmem:[%s3] sm:$0xff]
    %v130 = vmul.f32 %v121, %v128
    %v131 = vsub.f32 %v129, %v130
    %133 = vset.pattern.permute.xlu0 0
    %134 = vperm.xlu0 %133, %v128
    %v135 = vpop.permute.xlu0 %134
    %v137 = vmul.f32 %v113, %v135
    %139 = vset.pattern.permute.xlu0 0
    %140 = vperm.xlu0 %139, %v131
    %v141 = vpop.permute.xlu0 %140
    %v143 = vadd.f32 %v137, %v141
    %v144 = vmax.f32 %v143, 0.0
    %145 = vst [vmem:[#allocation5] sm:$0xff] %v144
    // Predicated region
    $region22: #{tpu_custom_call.1} parent=1 // pred_check
      _
    $region23: #{tpu_custom_call.1} parent=1 // pred_check_branch
      %147 = sbr.rel (0) target = $region25
    $region24: #{tpu_custom_call.1} parent=1 // pred_region
      %s149 = ssub.s32 128, 128
      %150 = vsyncadd [#allocation4], %s149
      %s152 = sshll.u32 [#allocation5], 4
      %s153 = int_to_ptr.vmem [resolvable:$true] %s152
      %155 = dma.vmem_to_hbm [thread:$0]  %s153, 128, %s4, [#allocation4]
    $region25: #{tpu_custom_call.1} parent=1 // pred_fallthru
      _
    // Predicated region
    $region26: #{tpu_custom_call.1} parent=1 // pred_check
      _
    $region27: #{tpu_custom_call.1} parent=1 // pred_check_branch
      %157 = sbr.rel (0) target = $region29
    $region28: #{tpu_custom_call.1} parent=1 // pred_region
      %158 = dma.done [#allocation4], 128
    $region29: #{tpu_custom_call.1} parent=1 // pred_fallthru
      _
    %159 = vsyncpa [#allocation3], 1
    %160 = vsyncpa [#allocation4], 1

</llo_original>
